<compile_context>
chip_gen: v5e
topology: v5e:2x2
jax: 0.10.0
libtpu: 0.0.40
codegen_flags: <defaults>
</compile_context>

<pallas_src>
import functools

import jax
import jax.numpy as jnp
from jax.experimental import pallas as pl
from jax.experimental.pallas import tpu as pltpu


def bow_embedding_kernel(idx_ref, table_ref, out_ref):
    """One grid step: (C, T) indices + (E, V8) scaled table^T -> (E, T) output.

    out[e, t] = sum_v table_ref[e, v] * #{c : idx[c, t] == v}
              = (1/C) * sum_c embedding[idx[c, t], e]          (mean over bag)
    """
    C, T = idx_ref.shape
    E, V8 = table_ref.shape

    idx = idx_ref[...]                                            # (C, T) int32
    # Narrow (V8, 1) vocab-id column; the `==` broadcasts it across lanes so no
    # full-width (V8, T) iota is held live.
    col_iota = jax.lax.broadcasted_iota(jnp.int32, (V8, 1), 0)

    # Bag-of-words counts: counts[v, t] = #{c : idx[c, t] == v}.  C is small
    # and static -> unrolled.  Initialize from the c=0 compare (no zeros+add),
    # accumulate in int32, convert to f32 once before the dot.
    row0 = jax.lax.slice(idx, (0, 0), (1, T))                     # (1, T)
    counts = (row0 == col_iota).astype(jnp.int32)                 # (V8, T)
    for c in range(1, C):
        row = jax.lax.slice(idx, (c, 0), (c + 1, T))              # (1, T)
        counts = counts + (row == col_iota).astype(jnp.int32)

    # (E, V8) @ (V8, T) on the MXU (small K is fine).  The 1/C mean scale is
    # already folded into table_ref, so no per-tile VPU rescale is needed.
    out_ref[...] = jnp.dot(table_ref[...], counts.astype(jnp.float32),
                           preferred_element_type=jnp.float32).astype(out_ref.dtype)


def image_bow_embedding(inputs, table, padding_idx=None, *, tile_hw=1024):
    """inputs: (B, C, H, W) int indices; table: (V, E) float32 embedding weight.

    Returns (B, E, H, W) float32, matching the PyTorch module output.
    """
    B, C, H, W = inputs.shape
    V, E = table.shape
    HW = H * W

    # --- Scaled, transposed table (E, V8): vocab padded only to a sublane
    # multiple (8), since the one-hot/counts build is the VPU-bound part and
    # extra zero vocab columns are pure waste.  Padded columns can never match
    # a valid index, so they contribute zero.
    tab = table.astype(jnp.float32)
    if padding_idx is not None:
        # nn.Embedding(padding_idx=...) keeps that row at zero; mean still /C.
        tab = tab.at[padding_idx].set(0.0)
    tab = tab * (1.0 / C)                   # fold the mean's 1/C into the table
    V8 = max(8, ((V + 7) // 8) * 8)
    table_t = jnp.zeros((E, V8), jnp.float32).at[:, :V].set(tab.T)
    # TODO(synk): for large tables on v7x (64 MiB VMEM/TC) hold table_t in bf16
    # (counts are exact small ints); for very large V switch to gather-accumulate.

    # --- Spatial tile (lane dim): multiple of 128 (unmasked stores) unless the
    # whole image fits in one sub-128 block, clamped to the image, big enough
    # to amortize the ~0.35 us per-grid-step overhead.
    if HW <= 128:
        tile_hw = HW                        # full-extent block, exempt from 128 rule
    else:
        tile_hw = max(128, min((tile_hw // 128) * 128, (HW // 128) * 128))
        # TODO(synk): gate this split on a multi-TensorCore part (v7x megacore);
        # on single-TC chips it only adds one extra grid step.
        if B == 1 and (HW + tile_hw - 1) // tile_hw < 2 and tile_hw >= 256:
            tile_hw = max(128, ((tile_hw // 2) // 128) * 128)

    # --- Flatten spatial dims only (free, row-major): (B, C, HW).  No padding
    # pass: the grid uses cdiv and Pallas masks the ragged last block on store.
    idx = inputs.reshape(B, C, HW).astype(jnp.int32)
    # TODO(synk): accept uint8/int16 indices and/or emit a bf16 output to cut
    # HBM traffic once downstream dtypes allow it.

    grid = (B, pl.cdiv(HW, tile_hw))

    # Single-buffer the grid-invariant table only when its double-buffer VMEM
    # cost is non-negligible (keeps realistic tables inside the VMEM budget;
    # pointless for tiny tables).
    table_spec_kwargs = {}
    if E * V8 * 4 >= (2 << 20):
        table_spec_kwargs = dict(pipeline_mode=pl.Buffered(1))

    out = pl.pallas_call(
        bow_embedding_kernel,
        out_shape=jax.ShapeDtypeStruct((B, E, HW), jnp.float32),
        grid_spec=pltpu.PrefetchScalarGridSpec(
            num_scalar_prefetch=0,
            grid=grid,
            in_specs=[
                # (1, C, tile_hw) index tile; batch dim squeezed in-kernel.
                pl.BlockSpec((None, C, tile_hw), lambda b, t: (b, 0, t)),
                # Full scaled table^T, grid-invariant and resident in VMEM.
                pl.BlockSpec((E, V8), lambda b, t: (0, 0), **table_spec_kwargs),
            ],
            # (1, E, tile_hw) output tile: lane-dense stores (masked only on a
            # ragged last block).
            out_specs=pl.BlockSpec((None, E, tile_hw), lambda b, t: (b, 0, t)),
        ),
        compiler_params=pltpu.CompilerParams(
            dimension_semantics=("parallel", "parallel"),
            # Headroom above v5e's 16 MiB scoped default; safe on v5e/v6e/v7x.
            vmem_limit_bytes=32 * 1024 * 1024,
        ),
    )(idx, table_t)

    # Output is already channels-first (B, E, HW): free reshape to NCHW.
    return out.reshape(B, E, H, W)


def reference(inputs, table, padding_idx=None):
    tab = table
    if padding_idx is not None:
        tab = tab.at[padding_idx].set(0.0)
    emb = tab[inputs]                         # (B, C, H, W, E)
    emb = jnp.mean(emb, axis=1)               # (B, H, W, E)
    return jnp.transpose(emb, (0, 3, 1, 2))   # (B, E, H, W)


if __name__ == "__main__":
    key = jax.random.PRNGKey(0)
    k_idx, k_tab = jax.random.split(key)

    B, C, H, W = 2, 4, 16, 16          # batch, bag-size, spatial
    num_embeddings, embedding_dim = 16, 32
    padding_idx = None                 # module default

    inputs = jax.random.randint(k_idx, (B, C, H, W), 0, num_embeddings, dtype=jnp.int32)
    # nn.Embedding default init: N(0, 1)
    table = jax.random.normal(k_tab, (num_embeddings, embedding_dim), dtype=jnp.float32)

    fn = jax.jit(functools.partial(image_bow_embedding, padding_idx=padding_idx))
    out = jax.block_until_ready(fn(inputs, table))

    ref = reference(inputs, table, padding_idx)
    assert out.shape == (B, embedding_dim, H, W), out.shape
    assert jnp.allclose(out, ref, atol=1e-5, rtol=1e-5), "mismatch vs reference"

    print("KERNEL_OK")
</pallas_src>

<mosaic_0001>
module attributes {stable_mosaic.version = 11 : i64} {
  func.func @bow_embedding_kernel(%arg0: i32, %arg1: i32, %arg2: memref<1x4x256xi32, #tpu.memory_space<vmem>>, %arg3: memref<32x16xf32, #tpu.memory_space<vmem>>, %arg4: memref<1x32x256xf32, #tpu.memory_space<vmem>>) attributes {dimension_semantics = [#tpu.dimension_semantics<parallel>, #tpu.dimension_semantics<parallel>], iteration_bounds = array<i64: 2, 1>, scalar_prefetch = 0 : i64, scratch_operands = 0 : i64, tpu.core_type = #tpu.core_type<tc>, window_params = [{transform_indices = @transform_0, window_bounds = array<i64: 1, 4, 256>}, {pipeline_mode = #tpu.pipeline_mode<synchronous>, transform_indices = @transform_1, window_bounds = array<i64: 32, 16>}, {transform_indices = @transform_2, window_bounds = array<i64: 1, 32, 256>}]} {
    %c0 = arith.constant 0 : index
    %c0_0 = arith.constant 0 : index
    %c0_1 = arith.constant 0 : index
    %0 = vector.load %arg2[%c0, %c0_0, %c0_1] : memref<1x4x256xi32, #tpu.memory_space<vmem>>, vector<1x4x256xi32>
    %1 = vector.shape_cast %0 : vector<1x4x256xi32> to vector<4x256xi32>
    %2 = tpu.iota {dimensions = array<i32: 0>} : vector<16x1xi32>
    %3 = vector.extract_strided_slice %1 {offsets = [0, 0], sizes = [1, 256], strides = [1, 1]} : vector<4x256xi32> to vector<1x256xi32>
    %4 = vector.broadcast %3 : vector<1x256xi32> to vector<16x256xi32>
    %5 = vector.broadcast %2 : vector<16x1xi32> to vector<16x256xi32>
    %6 = arith.cmpi eq, %4, %5 : vector<16x256xi32>
    %7 = arith.extui %6 : vector<16x256xi1> to vector<16x256xi32>
    %8 = vector.extract_strided_slice %1 {offsets = [1, 0], sizes = [1, 256], strides = [1, 1]} : vector<4x256xi32> to vector<1x256xi32>
    %9 = vector.broadcast %8 : vector<1x256xi32> to vector<16x256xi32>
    %10 = vector.broadcast %2 : vector<16x1xi32> to vector<16x256xi32>
    %11 = arith.cmpi eq, %9, %10 : vector<16x256xi32>
    %12 = arith.extui %11 : vector<16x256xi1> to vector<16x256xi32>
    %13 = arith.addi %7, %12 : vector<16x256xi32>
    %14 = vector.extract_strided_slice %1 {offsets = [2, 0], sizes = [1, 256], strides = [1, 1]} : vector<4x256xi32> to vector<1x256xi32>
    %15 = vector.broadcast %14 : vector<1x256xi32> to vector<16x256xi32>
    %16 = vector.broadcast %2 : vector<16x1xi32> to vector<16x256xi32>
    %17 = arith.cmpi eq, %15, %16 : vector<16x256xi32>
    %18 = arith.extui %17 : vector<16x256xi1> to vector<16x256xi32>
    %19 = arith.addi %13, %18 : vector<16x256xi32>
    %20 = vector.extract_strided_slice %1 {offsets = [3, 0], sizes = [1, 256], strides = [1, 1]} : vector<4x256xi32> to vector<1x256xi32>
    %21 = vector.broadcast %20 : vector<1x256xi32> to vector<16x256xi32>
    %22 = vector.broadcast %2 : vector<16x1xi32> to vector<16x256xi32>
    %23 = arith.cmpi eq, %21, %22 : vector<16x256xi32>
    %24 = arith.extui %23 : vector<16x256xi1> to vector<16x256xi32>
    %25 = arith.addi %19, %24 : vector<16x256xi32>
    %c0_2 = arith.constant 0 : index
    %c0_3 = arith.constant 0 : index
    %26 = vector.load %arg3[%c0_2, %c0_3] : memref<32x16xf32, #tpu.memory_space<vmem>>, vector<32x16xf32>
    %27 = arith.sitofp %25 : vector<16x256xi32> to vector<16x256xf32>
    %cst = arith.constant dense<0.000000e+00> : vector<32x256xf32>
    %28 = tpu.matmul %26, %27, %cst {dimension_numbers = #tpu.dot_dimension_numbers<[1], [0], [0], [1], [0, 0, 1, 1], [], []>} : vector<32x16xf32>, vector<16x256xf32>, vector<32x256xf32> -> vector<32x256xf32>
    %c0_4 = arith.constant 0 : index
    %c0_5 = arith.constant 0 : index
    %c0_6 = arith.constant 0 : index
    %29 = vector.load %arg4[%c0_4, %c0_5, %c0_6] : memref<1x32x256xf32, #tpu.memory_space<vmem>>, vector<1x32x256xf32>
    %30 = vector.shape_cast %29 : vector<1x32x256xf32> to vector<32x256xf32>
    %31 = vector.shape_cast %28 : vector<32x256xf32> to vector<1x32x256xf32>
    tpu.vector_store %arg4[%c0_4, %c0_5, %c0_6], %31 {strides = array<i32>} : memref<1x32x256xf32, #tpu.memory_space<vmem>>, vector<1x32x256xf32>,
    return
  }
  func.func @transform_0(%arg0: i32, %arg1: i32) -> (i32, i32, i32) {
    %c0_i32 = arith.constant 0 : i32
    %c0_i32_0 = arith.constant 0 : i32
    return %arg0, %c0_i32, %arg1 : i32, i32, i32
  }
  func.func @transform_1(%arg0: i32, %arg1: i32) -> (i32, i32) {
    %c0_i32 = arith.constant 0 : i32
    %c0_i32_0 = arith.constant 0 : i32
    %c0_i32_1 = arith.constant 0 : i32
    return %c0_i32, %c0_i32_0 : i32, i32
  }
  func.func @transform_2(%arg0: i32, %arg1: i32) -> (i32, i32, i32) {
    %c0_i32 = arith.constant 0 : i32
    %c0_i32_0 = arith.constant 0 : i32
    return %arg0, %c0_i32, %arg1 : i32, i32, i32
  }
}

</mosaic_0001>

<llo_original>
// kernel: image_bow_embedding.1
$region0: #{image_bow_embedding.1}
  #allocation0 [shape = 'u32[]', space=smem, size = 0x4, offset = 0x4, fixed_abs, tag = 'smem constant byte address 0x4 - core index']
  #allocation1 [shape = 'u32[72,128]{1,0:T(1,128)}', space=vmem, size = 0x9000, scoped, tag = 'internal scratch']
  %s0 = inlined_call_operand.vmem [shape: s32[2,4,256], index: 0, kind: input, shape index: {}]
  %s1 = inlined_call_operand.vmem [shape: f32[32,16], index: 1, kind: input, shape index: {}]
  %s2 = inlined_call_operand.vmem [shape: f32[2,32,256], index: 2, kind: output, shape index: {}]
  %s3 = sld [smem:[#allocation0]]
  $region41: #{image_bow_embedding.1} parent=0
    _
  %s5 = ssub.s32 1, %s3
  %s6 = scalar_select 0, %s5, %s3
  loop: start=0, step=1, limit=4
  $region2: #{image_bow_embedding.1} parent=0 // loop_pre_header
    _
  $region3: #{image_bow_embedding.1} parent=0 // loop_header
    %s8 = sphi 0, %s12
    %p9 = scmp.ge.s32.totalorder %s8, 4
    %s15 = sphi 0, %s27
    %s16 = sphi 0, %s23
    %s17 = sphi 0, %s15
    %s18 = sphi 0, %s16
    %s19 = sphi 0, %s17
    %s20 = sphi 0, %s18
    %s32 = sphi 0, %s34
    %s35 = sphi 0, %s32
    %s36 = sphi 0, %s35
    %s52 = sphi 0, %s36
    %s56 = sphi 0, %s56
    %s58 = sphi 0, %s56
    %s59 = sphi 0, %s58
    %s73 = sphi 0, %s59
    %s81 = sphi 0, %s83
    %s84 = sphi 0, %s81
    %s85 = sphi 0, %s84
    %s101 = sphi 0, %s85
  $region4: #{image_bow_embedding.1} parent=0 // loop_header_branch
    %11 = sbr.rel (%p9) target = $region8
  $region5: #{image_bow_embedding.1} parent=0 // loop_body
    %s13 = ssub.s32 %s8, 1
    %s14 = ssub.s32 %s8, 2
    %s21 = sadd.s32 1, %s16
    %p22 = scmp.ge.s32.totalorder %s21, 1
    %s23 = scalar_select %p22, 0, %s21
    %s24 = sadd.s32 1, %s15
    %s25 = scalar_select %p22, %s24, %s15
    %p26 = scmp.ge.s32.totalorder %s25, 2
    %s27 = scalar_select %p26, 0, %s25
    %s28 = ssub.s32 %s15, %s27
    %s29 = ssub.s32 %s16, %s23
    %s30 = sor.u32 %s28, %s29
    %p31 = scmp.eq.s32.totalorder %s30, 0
    %s33 = sadd.s32 %s32, 1
    %s34 = scalar_select %p31, %s32, %s33
    %p37 = pneg %p31
    %p38 = scmp.eq.s32.totalorder %s8, 1
    %p39 = por %p37, %p38
    %p40 = scmp.ne.s32.totalorder %s32, %s35
    %p41 = scmp.eq.s32.totalorder %s8, 0
    %p42 = por %p40, %p41
    %p43 = scmp.ne.s32.totalorder %s32, %s35
    %p44 = scmp.eq.s32.totalorder %s13, 1
    %p45 = por %p43, %p44
    %p46 = scmp.ne.s32.totalorder %s35, %s36
    %p47 = scmp.eq.s32.totalorder %s13, 0
    %p48 = por %p46, %p47
    %p49 = scmp.ne.s32.totalorder %s35, %s36
    %p50 = scmp.eq.s32.totalorder %s14, 1
    %p51 = por %p49, %p50
    %p53 = scmp.ne.s32.totalorder %s36, %s52
    %p54 = scmp.eq.s32.totalorder %s14, 0
    %p55 = por %p53, %p54
    %s57 = sadd.s32 %s56, 1
    %p60 = scmp.eq.s32.totalorder %s8, 1
    %p61 = scmp.ne.s32.totalorder %s56, %s58
    %p62 = scmp.eq.s32.totalorder %s8, 0
    %p63 = por %p61, %p62
    %p64 = scmp.ne.s32.totalorder %s56, %s58
    %p65 = scmp.eq.s32.totalorder %s13, 1
    %p66 = por %p64, %p65
    %p67 = scmp.ne.s32.totalorder %s58, %s59
    %p68 = scmp.eq.s32.totalorder %s13, 0
    %p69 = por %p67, %p68
    %p70 = scmp.ne.s32.totalorder %s58, %s59
    %p71 = scmp.eq.s32.totalorder %s14, 1
    %p72 = por %p70, %p71
    %p74 = scmp.ne.s32.totalorder %s59, %s73
    %p75 = scmp.eq.s32.totalorder %s14, 0
    %p76 = por %p74, %p75
    %s77 = ssub.s32 %s15, %s27
    %s78 = ssub.s32 %s16, %s23
    %s79 = sor.u32 %s77, %s78
    %p80 = scmp.eq.s32.totalorder %s79, 0
    %s82 = sadd.s32 %s81, 1
    %s83 = scalar_select %p80, %s81, %s82
    %p86 = pneg %p80
    %p87 = scmp.eq.s32.totalorder %s8, 1
    %p88 = por %p86, %p87
    %p89 = scmp.ne.s32.totalorder %s81, %s84
    %p90 = scmp.eq.s32.totalorder %s8, 0
    %p91 = por %p89, %p90
    %p92 = scmp.ne.s32.totalorder %s81, %s84
    %p93 = scmp.eq.s32.totalorder %s13, 1
    %p94 = por %p92, %p93
    %p95 = scmp.ne.s32.totalorder %s84, %s85
    %p96 = scmp.eq.s32.totalorder %s13, 0
    %p97 = por %p95, %p96
    %p98 = scmp.ne.s32.totalorder %s84, %s85
    %p99 = scmp.eq.s32.totalorder %s14, 1
    %p100 = por %p98, %p99
    %p102 = scmp.ne.s32.totalorder %s85, %s101
    %p103 = scmp.eq.s32.totalorder %s14, 0
    %p104 = por %p102, %p103
    %p105 = scmp.le.s32.totalorder 1, %s8
    %p106 = scmp.lt.s32.totalorder %s8, 3
    %p107 = pnand %p105, %p106
    %p108 = pneg %p107
    // Predicated region
    $region9: #{image_bow_embedding.1} parent=5 // pred_check
      _
    $region10: #{image_bow_embedding.1} parent=5 // pred_check_branch
      %110 = sbr.rel (%p107) target = $region12
    $region11: #{image_bow_embedding.1} parent=5 // pred_region
      %s111 = ssub.s32 %s8, 1
      // Predicated region
      $region13: #{image_bow_embedding.1} parent=11 // pred_check
        %p112 = pneg %p69
      $region14: #{image_bow_embedding.1} parent=11 // pred_check_branch
        %114 = sbr.rel (%p112) target = $region16
      $region15: #{image_bow_embedding.1} parent=11 // pred_region
        _
      $region16: #{image_bow_embedding.1} parent=11 // pred_fallthru
        _
    $region12: #{image_bow_embedding.1} parent=5 // pred_fallthru
      _
    %p115 = scmp.lt.s32.totalorder %s8, 2
    // Predicated region
    $region17: #{image_bow_embedding.1} parent=5 // pred_check
      %p116 = pneg %p115
    $region18: #{image_bow_embedding.1} parent=5 // pred_check_branch
      %118 = sbr.rel (%p116) target = $region20
    $region19: #{image_bow_embedding.1} parent=5 // pred_region
      // Predicated region
      $region21: #{image_bow_embedding.1} parent=19 // pred_check
        %p119 = pneg %p42
      $region22: #{image_bow_embedding.1} parent=19 // pred_check_branch
        %121 = sbr.rel (%p119) target = $region24
      $region23: #{image_bow_embedding.1} parent=19 // pred_region
        %s122 = smul.u32 2, %s16
        %p123 = scmp.lt.s32.totalorder %s15, 1
        %s124 = scalar_select %p123, %s15, 1
        %p125 = scmp.lt.s32.totalorder %s122, 1
        %s126 = scalar_select %p125, %s122, 1
        %s127 = smul.addr %s124, 2
        %s128 = sadd.s32 %s126, %s127
        %s129 = smul.addr %s128, 4
        %s130 = scalar_lea.vmem %s0, %s129
        %s131 = smul.u32 2, %s16
      $region24: #{image_bow_embedding.1} parent=19 // pred_fallthru
        _
    $region20: #{image_bow_embedding.1} parent=5 // pred_fallthru
      _
    %p132 = scmp.le.s32.totalorder 1, %s8
    %p133 = scmp.lt.s32.totalorder %s8, 3
    %p134 = pnand %p132, %p133
    %p135 = pneg %p134
    // Predicated region
    $region25: #{image_bow_embedding.1} parent=5 // pred_check
      _
    $region26: #{image_bow_embedding.1} parent=5 // pred_check_branch
      %137 = sbr.rel (%p134) target = $region28
    $region27: #{image_bow_embedding.1} parent=5 // pred_region
      %s138 = ssub.s32 %s8, 1
      %s139 = smul.u32 2, %s18
      %p140 = scmp.lt.s32.totalorder %s17, 1
      %s141 = scalar_select %p140, %s17, 1
      %p142 = scmp.lt.s32.totalorder %s139, 1
      %s143 = scalar_select %p142, %s139, 1
      %s144 = smul.addr %s141, 2
      %s145 = sadd.s32 %s143, %s144
      %s146 = smul.addr %s145, 4
      %s147 = scalar_lea.vmem %s0, %s146
      %p148 = pneg %p48
      %p149 = pneg %p45
      %p150 = pneg %p69
      %p151 = pneg %p66
      %p152 = pneg %p97
      %p153 = pneg %p94
      %s154 = smul.u32 2, %s18
      %p155 = scmp.lt.s32.totalorder %s17, 1
      %s156 = scalar_select %p155, %s17, 1
      %p157 = scmp.lt.s32.totalorder %s154, 1
      %s158 = scalar_select %p157, %s154, 1
      %s159 = smul.addr %s156, 8
      %s160 = sadd.s32 %s158, %s159
      %s161 = smul.addr %s160, 8
      %s162 = scalar_lea.vmem %s2, %s161
      %s163 = smul.u32 2, %s18
      %p164 = scmp.lt.s32.totalorder %s17, 1
      %s165 = scalar_select %p164, %s17, 1
      %p166 = scmp.lt.s32.totalorder %s163, 1
      %s167 = scalar_select %p166, %s163, 1
      %s168 = smul.addr %s165, 2
      %s169 = sadd.s32 %s167, %s168
      %s170 = smul.addr %s169, 4
      %s171 = scalar_lea.vmem %s0, %s170
      %s172 = smul.u32 2, %s18
      %s173 = smul.u32 2, %s18
      %p174 = scmp.lt.s32.totalorder %s17, 1
      %s175 = scalar_select %p174, %s17, 1
      %p176 = scmp.lt.s32.totalorder %s173, 1
      %s177 = scalar_select %p176, %s173, 1
      %s178 = smul.addr %s175, 8
      %s179 = sadd.s32 %s177, %s178
      %s180 = smul.addr %s179, 8
      %s181 = scalar_lea.vmem %s2, %s180
      %s182 = smul.u32 2, %s18
      %v183 = vld [vmem:[%s171] sm:$0xff]
      %v184 = vlaneseq
      %v185 = vshrl.u32 %v184, 7
      %v186 = vadd.s32 %v185, 8
      %v187 = vperm.slane %v183, 0
      %v188 = vperm.slane %v183, 4
      %v189 = vperm.slane %v187, 0
      %v190 = vperm.slane %v188, 0
      %vm191 = vcmp.eq.s32.totalorder %v189, %v185
      %vm192 = vcmp.eq.s32.totalorder %v190, %v185
      %vm193 = vcmp.eq.s32.totalorder %v189, %v186
      %vm194 = vcmp.eq.s32.totalorder %v190, %v186
      %v195 = vsel %vm191, 1, 0
      %v196 = vsel %vm192, 1, 0
      %v197 = vsel %vm193, 1, 0
      %v198 = vsel %vm194, 1, 0
      %v199 = vperm.slane %v183, 1
      %v200 = vperm.slane %v183, 5
      %v201 = vperm.slane %v199, 1
      %v202 = vperm.slane %v200, 1
      %vm203 = vcmp.eq.s32.totalorder %v201, %v185
      %vm204 = vcmp.eq.s32.totalorder %v202, %v185
      %vm205 = vcmp.eq.s32.totalorder %v201, %v186
      %vm206 = vcmp.eq.s32.totalorder %v202, %v186
      %v207 = vsel %vm203, 1, 0
      %v208 = vsel %vm204, 1, 0
      %v209 = vsel %vm205, 1, 0
      %v210 = vsel %vm206, 1, 0
      %v211 = vadd.s32 %v195, %v207
      %v212 = vadd.s32 %v196, %v208
      %v213 = vadd.s32 %v197, %v209
      %v214 = vadd.s32 %v198, %v210
      %v215 = vperm.slane %v183, 2
      %v216 = vperm.slane %v183, 6
      %v217 = vperm.slane %v215, 2
      %v218 = vperm.slane %v216, 2
      %vm219 = vcmp.eq.s32.totalorder %v217, %v185
      %vm220 = vcmp.eq.s32.totalorder %v218, %v185
      %vm221 = vcmp.eq.s32.totalorder %v217, %v186
      %vm222 = vcmp.eq.s32.totalorder %v218, %v186
      %v223 = vsel %vm219, 1, 0
      %v224 = vsel %vm220, 1, 0
      %v225 = vsel %vm221, 1, 0
      %v226 = vsel %vm222, 1, 0
      %v227 = vadd.s32 %v211, %v223
      %v228 = vadd.s32 %v212, %v224
      %v229 = vadd.s32 %v213, %v225
      %v230 = vadd.s32 %v214, %v226
      %v231 = vperm.slane %v183, 3
      %v232 = vperm.slane %v183, 7
      %v233 = vperm.slane %v231, 3
      %v234 = vperm.slane %v232, 3
      %vm235 = vcmp.eq.s32.totalorder %v233, %v185
      %vm236 = vcmp.eq.s32.totalorder %v234, %v185
      %vm237 = vcmp.eq.s32.totalorder %v233, %v186
      %vm238 = vcmp.eq.s32.totalorder %v234, %v186
      %v239 = vsel %vm235, 1, 0
      %v240 = vsel %vm236, 1, 0
      %v241 = vsel %vm237, 1, 0
      %v242 = vsel %vm238, 1, 0
      %v243 = vadd.s32 %v227, %v239
      %v244 = vadd.s32 %v228, %v240
      %v245 = vadd.s32 %v229, %v241
      %v246 = vadd.s32 %v230, %v242
      %v247 = vld [vmem:[%s1] sm:$0xff]
      %v248 = vld [vmem:[%s1 + $0x8] sm:$0xff]
      %v249 = vld [vmem:[%s1 + $0x10] sm:$0xff]
      %v250 = vld [vmem:[%s1 + $0x18] sm:$0xff]
      %v251 = vcvt.s32.f32 %v243
      %v252 = vcvt.s32.f32 %v244
      %v253 = vcvt.s32.f32 %v245
      %v254 = vcvt.s32.f32 %v246
      %vm255 = vcmask 130048
      %v257 = vsel %vm255, %v247, 0
      %v260 = vsel %vm255, %v248, 0
      %v263 = vsel %vm255, %v249, 0
      %v266 = vsel %vm255, %v250, 0
      %268 = vmatpush.msra.mxu0 0.0
      %269 = vmatpush.msra.mxu0 0.0
      %270 = vmatpush.msra.mxu0 0.0
      %271 = vmatpush.msra.mxu0 0.0
      %272 = vmatpush.msra.mxu0 0.0
      %273 = vmatpush.msra.mxu0 0.0
      %274 = vmatpush.msra.mxu0 0.0
      %275 = vmatpush.msra.mxu0 0.0
      %276 = vmatpush.msra.mxu0 0.0
      %277 = vmatpush.msra.mxu0 0.0
      %278 = vmatpush.msra.mxu0 0.0
      %279 = vmatpush.msra.mxu0 0.0
      %280 = vmatpush.msra.mxu0 0.0
      %281 = vmatpush.msra.mxu0 0.0
      %282 = vmatpush.msra.mxu0 %v253
      %283 = vmatpush.msra.mxu0 %v251
      %284 = vmatmul.f32.gmra.mxu0 %v257
      %v285 = vpop.f32.mrf.mxu0
      %v286 = vadd.f32 0.0, %v285
      %287 = vmatmul.f32.gmra.mxu0 %v260
      %v288 = vpop.f32.mrf.mxu0
      %v289 = vadd.f32 0.0, %v288
      %290 = vmatmul.f32.gmra.mxu0 %v263
      %v291 = vpop.f32.mrf.mxu0
      %v292 = vadd.f32 0.0, %v291
      %293 = vmatmul.f32.gmra.mxu0 %v266
      %v294 = vpop.f32.mrf.mxu0
      %v295 = vadd.f32 0.0, %v294
      %296 = vdwg.mxu0
      %297 = vmatpush.msra.mxu0 0.0
      %298 = vmatpush.msra.mxu0 0.0
      %299 = vmatpush.msra.mxu0 0.0
      %300 = vmatpush.msra.mxu0 0.0
      %301 = vmatpush.msra.mxu0 0.0
      %302 = vmatpush.msra.mxu0 0.0
      %303 = vmatpush.msra.mxu0 0.0
      %304 = vmatpush.msra.mxu0 0.0
      %305 = vmatpush.msra.mxu0 0.0
      %306 = vmatpush.msra.mxu0 0.0
      %307 = vmatpush.msra.mxu0 0.0
      %308 = vmatpush.msra.mxu0 0.0
      %309 = vmatpush.msra.mxu0 0.0
      %310 = vmatpush.msra.mxu0 0.0
      %311 = vmatpush.msra.mxu0 %v254
      %312 = vmatpush.msra.mxu0 %v252
      %313 = vmatmul.f32.gmra.mxu0 %v257
      %v314 = vpop.f32.mrf.mxu0
      %v315 = vadd.f32 0.0, %v314
      %316 = vmatmul.f32.gmra.mxu0 %v260
      %v317 = vpop.f32.mrf.mxu0
      %v318 = vadd.f32 0.0, %v317
      %319 = vmatmul.f32.gmra.mxu0 %v263
      %v320 = vpop.f32.mrf.mxu0
      %v321 = vadd.f32 0.0, %v320
      %322 = vmatmul.f32.gmra.mxu0 %v266
      %v323 = vpop.f32.mrf.mxu0
      %v324 = vadd.f32 0.0, %v323
      %325 = vdwg.mxu0
      %326 = vst [vmem:[%s181] sm:$0xff] %v286
      %327 = vst [vmem:[%s181 + $0x8] sm:$0xff] %v315
      %328 = vst [vmem:[%s181 + $0x10] sm:$0xff] %v289
      %329 = vst [vmem:[%s181 + $0x18] sm:$0xff] %v318
      %330 = vst [vmem:[%s181 + $0x20] sm:$0xff] %v292
      %331 = vst [vmem:[%s181 + $0x28] sm:$0xff] %v321
      %332 = vst [vmem:[%s181 + $0x30] sm:$0xff] %v295
      %333 = vst [vmem:[%s181 + $0x38] sm:$0xff] %v324
      %s334 = smul.u32 2, %s18
      %p335 = scmp.lt.s32.totalorder %s17, 1
      %s336 = scalar_select %p335, %s17, 1
      %p337 = scmp.lt.s32.totalorder %s334, 1
      %s338 = scalar_select %p337, %s334, 1
      %s339 = smul.addr %s336, 8
      %s340 = sadd.s32 %s338, %s339
      %s341 = smul.addr %s340, 8
      %s342 = scalar_lea.vmem %s2, %s341
      // Predicated region
      $region29: #{image_bow_embedding.1} parent=27 // pred_check
        %p343 = pneg %p94
      $region30: #{image_bow_embedding.1} parent=27 // pred_check_branch
        %345 = sbr.rel (%p343) target = $region32
      $region31: #{image_bow_embedding.1} parent=27 // pred_region
        %s346 = smul.u32 2, %s18
      $region32: #{image_bow_embedding.1} parent=27 // pred_fallthru
        _
    $region28: #{image_bow_embedding.1} parent=5 // pred_fallthru
      _
    %p347 = scmp.le.s32.totalorder 2, %s8
    // Predicated region
    $region33: #{image_bow_embedding.1} parent=5 // pred_check
      %p348 = pneg %p347
    $region34: #{image_bow_embedding.1} parent=5 // pred_check_branch
      %350 = sbr.rel (%p348) target = $region36
    $region35: #{image_bow_embedding.1} parent=5 // pred_region
      %s351 = ssub.s32 %s8, 2
      // Predicated region
      $region37: #{image_bow_embedding.1} parent=35 // pred_check
        %p352 = pneg %p100
      $region38: #{image_bow_embedding.1} parent=35 // pred_check_branch
        %354 = sbr.rel (%p352) target = $region40
      $region39: #{image_bow_embedding.1} parent=35 // pred_region
        %s355 = smul.u32 2, %s20
        %p356 = scmp.lt.s32.totalorder %s19, 1
        %s357 = scalar_select %p356, %s19, 1
        %p358 = scmp.lt.s32.totalorder %s355, 1
        %s359 = scalar_select %p358, %s355, 1
        %s360 = smul.addr %s357, 8
        %s361 = sadd.s32 %s359, %s360
        %s362 = smul.addr %s361, 8
        %s363 = scalar_lea.vmem %s2, %s362
      $region40: #{image_bow_embedding.1} parent=35 // pred_fallthru
        _
    $region36: #{image_bow_embedding.1} parent=5 // pred_fallthru
      _
  $region6: #{image_bow_embedding.1} parent=0 // loop_footer
    %s12 = sadd.s32 1, %s8
  $region7: #{image_bow_embedding.1} parent=0 // loop_footer_branch
    %7 = sbr.rel target = $region3
  $region8: #{image_bow_embedding.1} parent=0 // loop_exit
    _

</llo_original>
